<compile_context>
chip_gen: v6e
topology: v6e:2x2x1
jax: 0.10.0
libtpu: 0.0.40
codegen_flags: <defaults>
</compile_context>

<pallas_src>
import jax
import jax.numpy as jnp
from jax.experimental import pallas as pl
from jax.experimental.pallas import tpu as pltpu


# ----------------------------------------------------------------------------
# Kernel
# ----------------------------------------------------------------------------
def _ve_disc_kernel(vflat_ref, e_ref, wv_ref, we_ref, bv_ref, be_ref,
                    wc_ref, bc_ref, out_ref):
    # vflat_ref: [TB, N*v_dim] (mxu dtype, pipelined)
    # e_ref:     [TB, e_dim]   (mxu dtype, pipelined)
    # wv_ref:    [N*v_dim, mm] (tile(Wv, N)/N, mxu dtype, grid-resident)
    # we_ref:    [e_dim, mm]   (mxu dtype, grid-resident)
    # bv_ref/be_ref/wc_ref: [1, mm] f32 (grid-resident)
    # bc_ref:    [1, 1] f32 in SMEM
    # out_ref:   [1, TB] f32   (batch on the lane axis -> dense stores)
    proj_v = jnp.dot(vflat_ref[...], wv_ref[...],
                     preferred_element_type=jnp.float32) + bv_ref[...]
    proj_e = jnp.dot(e_ref[...], we_ref[...],
                     preferred_element_type=jnp.float32) + be_ref[...]
    ve = jnp.tanh(proj_v) * jnp.tanh(proj_e)                           # [TB, mm]

    # Classifier [mm -> 1]: VPU multiply + lane reduce (no 1-column MXU pass).
    logit = jnp.sum(ve * wc_ref[...], axis=-1) + bc_ref[0, 0]          # [TB]
    out_ref[...] = jax.nn.sigmoid(logit)[None, :]                      # [1, TB]


# ----------------------------------------------------------------------------
# Tiling policy
# ----------------------------------------------------------------------------
_VMEM_BUDGET_BYTES = 24 << 20  # conservative across v5e/v6e/v7x scoped VMEM


def _num_tensorcores():
    """2 on v7x (dual-TC chips), 1 on v5e/v6e.  Best-effort; safe fallback."""
    try:
        kind = jax.devices()[0].device_kind.lower()
        return 2 if "v7" in kind else 1
    except Exception:
        return 1


def _pick_batch_tile(B, Kv, e_dim, dtype_bytes, resident_bytes, num_tc,
                     max_batch_tile=None):
    """Largest batch tile whose double-buffered v+e tiles (+ resident weights)
    fit the VMEM budget.  When tiling, tb is a multiple of 128 so the [1, TB]
    output block stays lane-aligned.  On 2-TC parts, large batches are split so
    the grid has >= 2 steps and both TensorCores stream HBM."""
    per_row = 2 * (Kv + e_dim) * dtype_bytes + 2 * 4  # dbl-buffered in + out row
    budget = max(128 * per_row, _VMEM_BUDGET_BYTES - resident_bytes)
    tb_cap = budget // per_row
    if max_batch_tile is not None:
        tb_cap = min(tb_cap, max_batch_tile)

    force_split = (num_tc > 1) and (B >= 256)
    if B <= tb_cap and not force_split:
        return B, 1

    tb = max(128, (tb_cap // 128) * 128)
    if force_split:
        half = (((B + 1) // 2) + 127) // 128 * 128   # round_up(ceil(B/2), 128)
        tb = min(tb, half)
    grid = pl.cdiv(B, tb)
    return tb, grid


# ----------------------------------------------------------------------------
# Host-side wrappers
# ----------------------------------------------------------------------------
def prepare_params(params, n_objects, *, mxu_dtype=jnp.bfloat16):
    """Hoisted (call-once) weight preparation.

    Folds the object-axis mean into the v-projection weight by replicating Wv
    N times (scaled by 1/N) and casts the MXU operands.  Returns
    (wv_tiled, we, bv, be, wc_row, bc_scalar)."""
    wv, bv, we, be, wc, bc = params
    mm = wv.shape[-1]
    wv_tiled = (jnp.tile(wv, (n_objects, 1)) * (1.0 / n_objects)).astype(mxu_dtype)
    we_c = we.astype(mxu_dtype)
    bv_r = bv.reshape(1, mm).astype(jnp.float32)
    be_r = be.reshape(1, mm).astype(jnp.float32)
    wc_row = wc.reshape(1, mm).astype(jnp.float32)
    bc_s = bc.reshape(1, 1).astype(jnp.float32)
    return wv_tiled, we_c, bv_r, be_r, wc_row, bc_s


def ve_discriminator(v, e, prepared, *, max_batch_tile=None):
    """v: [B, N, v_dim], e: [B, e_dim], prepared = prepare_params(...).
    Returns sigmoid logits [B, 1] (f32)."""
    wv_tiled, we_c, bv_r, be_r, wc_row, bc_s = prepared
    B, N, v_dim = v.shape
    e_dim = e.shape[-1]
    mm = wc_row.shape[-1]
    Kv = N * v_dim
    assert wv_tiled.shape == (Kv, mm), (wv_tiled.shape, (Kv, mm))
    mxu_dtype = wv_tiled.dtype
    dtype_bytes = jnp.dtype(mxu_dtype).itemsize

    # MXU operands: contiguous (free) reshape + cast; v is the dominant stream.
    v_flat = v.reshape(B, Kv).astype(mxu_dtype)
    e_in = e.astype(mxu_dtype)

    resident_bytes = (Kv + e_dim) * mm * dtype_bytes + 3 * mm * 4 + 4
    tb, grid = _pick_batch_tile(B, Kv, e_dim, dtype_bytes, resident_bytes,
                                _num_tensorcores(), max_batch_tile)
    b_out = grid * tb  # lane-dense padded output width
    # NOTE: when B % tb != 0 the last grid step reads rows past B (undefined
    # HBM data); the resulting junk only lands in padded output lanes that are
    # sliced away below, so the returned [B, 1] result is always correct.

    footprint = (resident_bytes
                 + 2 * tb * (Kv + e_dim) * dtype_bytes   # double-buffered tiles
                 + 2 * tb * 4)                           # double-buffered out row
    vmem_limit = int(max(16 << 20, min(48 << 20, footprint + (8 << 20))))

    out_row = pl.pallas_call(
        _ve_disc_kernel,
        out_shape=jax.ShapeDtypeStruct((1, b_out), jnp.float32),
        grid=(grid,),
        in_specs=[
            pl.BlockSpec((tb, Kv), lambda i: (i, 0)),           # v tile (pipelined)
            pl.BlockSpec((tb, e_dim), lambda i: (i, 0)),        # e tile (pipelined)
            pl.BlockSpec((Kv, mm), lambda i: (0, 0)),           # resident wv_tiled
            pl.BlockSpec((e_dim, mm), lambda i: (0, 0)),        # resident we
            pl.BlockSpec((1, mm), lambda i: (0, 0)),            # resident bv
            pl.BlockSpec((1, mm), lambda i: (0, 0)),            # resident be
            pl.BlockSpec((1, mm), lambda i: (0, 0)),            # resident wc row
            pl.BlockSpec(memory_space=pltpu.MemorySpace.SMEM),  # bc scalar
        ],
        out_specs=pl.BlockSpec((1, tb), lambda i: (0, i)),      # lane-dense logits
        compiler_params=pltpu.CompilerParams(
            dimension_semantics=("parallel",),
            vmem_limit_bytes=vmem_limit),
    )(v_flat, e_in, wv_tiled, we_c, bv_r, be_r, wc_row, bc_s)

    return out_row[0, :B].reshape(B, 1)


# ----------------------------------------------------------------------------
# Synthetic params + pure-JAX reference
# ----------------------------------------------------------------------------
def init_params(key, v_dim, e_dim, mm_dim):
    """Deterministic synthetic init (shapes match the nn.Linear layers).
    Weights stored as [in_dim, out_dim]; biases as [1, out_dim]."""
    k = jax.random.split(key, 6)
    wv = jax.random.normal(k[0], (v_dim, mm_dim), jnp.float32) * 0.1
    bv = jax.random.normal(k[1], (1, mm_dim), jnp.float32) * 0.1
    we = jax.random.normal(k[2], (e_dim, mm_dim), jnp.float32) * 0.1
    be = jax.random.normal(k[3], (1, mm_dim), jnp.float32) * 0.1
    wc = jax.random.normal(k[4], (mm_dim, 1), jnp.float32) * 0.1
    bc = jax.random.normal(k[5], (1, 1), jnp.float32) * 0.1
    return wv, bv, we, be, wc, bc


def _reference(v, e, params):
    wv, bv, we, be, wc, bc = params
    vp = jnp.tanh(jnp.mean(v, axis=1) @ wv + bv)
    ep = jnp.tanh(e @ we + be)
    return jax.nn.sigmoid((vp * ep) @ wc + bc)


# ----------------------------------------------------------------------------
# Self-test
# ----------------------------------------------------------------------------
if __name__ == "__main__":
    B, N, v_dim, e_dim, mm_dim = 2, 8, 16, 32, 32

    key = jax.random.PRNGKey(0)
    kv, ke, kp = jax.random.split(key, 3)
    v = jax.random.normal(kv, (B, N, v_dim), jnp.float32)
    e = jax.random.normal(ke, (B, e_dim), jnp.float32)
    params = init_params(kp, v_dim, e_dim, mm_dim)

    ref = _reference(v, e, params)

    # Exact-semantics path (f32 MXU operands) -> tight tolerance.
    prep_f32 = prepare_params(params, N, mxu_dtype=jnp.float32)
    out_f32 = jax.block_until_ready(ve_discriminator(v, e, prep_f32))
    assert out_f32.shape == (B, 1)
    assert jnp.allclose(out_f32, ref, atol=1e-4, rtol=1e-4), (out_f32, ref)

    # Default fast path (bf16 MXU operands, f32 accumulation) -> loose tolerance.
    prep_bf16 = prepare_params(params, N, mxu_dtype=jnp.bfloat16)
    out_bf16 = jax.block_until_ready(ve_discriminator(v, e, prep_bf16))
    assert out_bf16.shape == (B, 1)
    assert jnp.allclose(out_bf16, ref, atol=5e-2, rtol=5e-2), (out_bf16, ref)

    # Multi-step (grid > 1) pipelined path with a ragged tail (B % tb != 0),
    # forced via max_batch_tile so it exercises the same code path at small size.
    B2 = 300
    kv2, ke2 = jax.random.split(jax.random.PRNGKey(1), 2)
    v2 = jax.random.normal(kv2, (B2, N, v_dim), jnp.float32)
    e2 = jax.random.normal(ke2, (B2, e_dim), jnp.float32)
    ref2 = _reference(v2, e2, params)
    out2 = jax.block_until_ready(
        ve_discriminator(v2, e2, prep_bf16, max_batch_tile=128))
    assert out2.shape == (B2, 1)
    assert jnp.allclose(out2, ref2, atol=5e-2, rtol=5e-2), (out2, ref2)

    print("KERNEL_OK")
</pallas_src>

<mosaic_0001>
module attributes {stable_mosaic.version = 11 : i64} {
  func.func @_ve_disc_kernel(%arg0: i32, %arg1: memref<2x128xf32, #tpu.memory_space<vmem>>, %arg2: memref<2x32xf32, #tpu.memory_space<vmem>>, %arg3: memref<128x32xf32, #tpu.memory_space<vmem>>, %arg4: memref<32x32xf32, #tpu.memory_space<vmem>>, %arg5: memref<1x32xf32, #tpu.memory_space<vmem>>, %arg6: memref<1x32xf32, #tpu.memory_space<vmem>>, %arg7: memref<1x32xf32, #tpu.memory_space<vmem>>, %arg8: memref<1x1xf32, #tpu.memory_space<smem>>, %arg9: memref<1x2xf32, #tpu.memory_space<vmem>>) attributes {dimension_semantics = [#tpu.dimension_semantics<parallel>], iteration_bounds = array<i64: 1>, scalar_prefetch = 0 : i64, scratch_operands = 0 : i64, tpu.core_type = #tpu.core_type<tc>, window_params = [{transform_indices = @transform_0, window_bounds = array<i64: 2, 128>}, {transform_indices = @transform_1, window_bounds = array<i64: 2, 32>}, {pipeline_mode = #tpu.pipeline_mode<synchronous>, transform_indices = @transform_2, window_bounds = array<i64: 128, 32>}, {pipeline_mode = #tpu.pipeline_mode<synchronous>, transform_indices = @transform_3, window_bounds = array<i64: 32, 32>}, {pipeline_mode = #tpu.pipeline_mode<synchronous>, transform_indices = @transform_4, window_bounds = array<i64: 1, 32>}, {pipeline_mode = #tpu.pipeline_mode<synchronous>, transform_indices = @transform_5, window_bounds = array<i64: 1, 32>}, {pipeline_mode = #tpu.pipeline_mode<synchronous>, transform_indices = @transform_6, window_bounds = array<i64: 1, 32>}, {transform_indices = @transform_7, window_bounds = array<i64: 1, 1>}, {transform_indices = @transform_8, window_bounds = array<i64: 1, 2>}]} {
    %c0 = arith.constant 0 : index
    %c0_0 = arith.constant 0 : index
    %0 = vector.load %arg1[%c0, %c0_0] : memref<2x128xf32, #tpu.memory_space<vmem>>, vector<2x128xf32>
    %c0_1 = arith.constant 0 : index
    %c0_2 = arith.constant 0 : index
    %1 = vector.load %arg3[%c0_1, %c0_2] : memref<128x32xf32, #tpu.memory_space<vmem>>, vector<128x32xf32>
    %cst = arith.constant dense<0.000000e+00> : vector<2x32xf32>
    %2 = tpu.matmul %0, %1, %cst {dimension_numbers = #tpu.dot_dimension_numbers<[1], [0], [0], [1], [0, 0, 1, 1], [], []>} : vector<2x128xf32>, vector<128x32xf32>, vector<2x32xf32> -> vector<2x32xf32>
    %c0_3 = arith.constant 0 : index
    %c0_4 = arith.constant 0 : index
    %3 = vector.load %arg5[%c0_3, %c0_4] : memref<1x32xf32, #tpu.memory_space<vmem>>, vector<1x32xf32>
    %4 = vector.broadcast %3 : vector<1x32xf32> to vector<2x32xf32>
    %5 = arith.addf %2, %4 : vector<2x32xf32>
    %c0_5 = arith.constant 0 : index
    %c0_6 = arith.constant 0 : index
    %6 = vector.load %arg2[%c0_5, %c0_6] : memref<2x32xf32, #tpu.memory_space<vmem>>, vector<2x32xf32>
    %c0_7 = arith.constant 0 : index
    %c0_8 = arith.constant 0 : index
    %7 = vector.load %arg4[%c0_7, %c0_8] : memref<32x32xf32, #tpu.memory_space<vmem>>, vector<32x32xf32>
    %cst_9 = arith.constant dense<0.000000e+00> : vector<2x32xf32>
    %8 = tpu.matmul %6, %7, %cst_9 {dimension_numbers = #tpu.dot_dimension_numbers<[1], [0], [0], [1], [0, 0, 1, 1], [], []>} : vector<2x32xf32>, vector<32x32xf32>, vector<2x32xf32> -> vector<2x32xf32>
    %c0_10 = arith.constant 0 : index
    %c0_11 = arith.constant 0 : index
    %9 = vector.load %arg6[%c0_10, %c0_11] : memref<1x32xf32, #tpu.memory_space<vmem>>, vector<1x32xf32>
    %10 = vector.broadcast %9 : vector<1x32xf32> to vector<2x32xf32>
    %11 = arith.addf %8, %10 : vector<2x32xf32>
    %12 = math.tanh %5 : vector<2x32xf32>
    %13 = math.tanh %11 : vector<2x32xf32>
    %14 = arith.mulf %12, %13 : vector<2x32xf32>
    %c0_12 = arith.constant 0 : index
    %c0_13 = arith.constant 0 : index
    %15 = vector.load %arg7[%c0_12, %c0_13] : memref<1x32xf32, #tpu.memory_space<vmem>>, vector<1x32xf32>
    %16 = vector.broadcast %15 : vector<1x32xf32> to vector<2x32xf32>
    %17 = arith.mulf %14, %16 : vector<2x32xf32>
    %cst_14 = arith.constant dense<0.000000e+00> : vector<2xf32>
    %18 = vector.multi_reduction <add>, %17, %cst_14 [1] : vector<2x32xf32> to vector<2xf32>
    %c0_15 = arith.constant 0 : index
    %c0_16 = arith.constant 0 : index
    %19 = memref.load %arg8[%c0_15, %c0_16] : memref<1x1xf32, #tpu.memory_space<smem>>
    %20 = vector.broadcast %19 : f32 to vector<2xf32>
    %21 = arith.addf %18, %20 : vector<2xf32>
    %22 = arith.negf %21 : vector<2xf32>
    %23 = math.exp %22 : vector<2xf32>
    %cst_17 = arith.constant 1.000000e+00 : f32
    %24 = vector.broadcast %cst_17 : f32 to vector<2xf32>
    %25 = arith.addf %24, %23 : vector<2xf32>
    %26 = arith.divf %24, %25 : vector<2xf32>
    %27 = vector.shape_cast %26 : vector<2xf32> to vector<1x2xf32>
    %c0_18 = arith.constant 0 : index
    %c0_19 = arith.constant 0 : index
    %28 = vector.load %arg9[%c0_18, %c0_19] : memref<1x2xf32, #tpu.memory_space<vmem>>, vector<1x2xf32>
    tpu.vector_store %arg9[%c0_18, %c0_19], %27 {strides = array<i32>} : memref<1x2xf32, #tpu.memory_space<vmem>>, vector<1x2xf32>,
    return
  }
  func.func @transform_0(%arg0: i32) -> (i32, i32) {
    %c0_i32 = arith.constant 0 : i32
    %c0_i32_0 = arith.constant 0 : i32
    return %arg0, %c0_i32 : i32, i32
  }
  func.func @transform_1(%arg0: i32) -> (i32, i32) {
    %c0_i32 = arith.constant 0 : i32
    %c0_i32_0 = arith.constant 0 : i32
    return %arg0, %c0_i32 : i32, i32
  }
  func.func @transform_2(%arg0: i32) -> (i32, i32) {
    %c0_i32 = arith.constant 0 : i32
    %c0_i32_0 = arith.constant 0 : i32
    %c0_i32_1 = arith.constant 0 : i32
    return %c0_i32, %c0_i32_0 : i32, i32
  }
  func.func @transform_3(%arg0: i32) -> (i32, i32) {
    %c0_i32 = arith.constant 0 : i32
    %c0_i32_0 = arith.constant 0 : i32
    %c0_i32_1 = arith.constant 0 : i32
    return %c0_i32, %c0_i32_0 : i32, i32
  }
  func.func @transform_4(%arg0: i32) -> (i32, i32) {
    %c0_i32 = arith.constant 0 : i32
    %c0_i32_0 = arith.constant 0 : i32
    %c0_i32_1 = arith.constant 0 : i32
    return %c0_i32, %c0_i32_0 : i32, i32
  }
  func.func @transform_5(%arg0: i32) -> (i32, i32) {
    %c0_i32 = arith.constant 0 : i32
    %c0_i32_0 = arith.constant 0 : i32
    %c0_i32_1 = arith.constant 0 : i32
    return %c0_i32, %c0_i32_0 : i32, i32
  }
  func.func @transform_6(%arg0: i32) -> (i32, i32) {
    %c0_i32 = arith.constant 0 : i32
    %c0_i32_0 = arith.constant 0 : i32
    %c0_i32_1 = arith.constant 0 : i32
    return %c0_i32, %c0_i32_0 : i32, i32
  }
  func.func @transform_7(%arg0: i32) -> (i32, i32) {
    %c0_i32 = arith.constant 0 : i32
    %c0_i32_0 = arith.constant 0 : i32
    %c0_i32_1 = arith.constant 0 : i32
    return %c0_i32, %c0_i32_0 : i32, i32
  }
  func.func @transform_8(%arg0: i32) -> (i32, i32) {
    %c0_i32 = arith.constant 0 : i32
    %c0_i32_0 = arith.constant 0 : i32
    return %c0_i32, %arg0 : i32, i32
  }
}

</mosaic_0001>

<llo_original>
// kernel: tpu_custom_call.1
$region0: #{tpu_custom_call.1}
  #allocation0 [shape = 'u32[]', space=smem, size = 0x4, offset = 0x4, fixed_abs, tag = 'smem constant byte address 0x4 - core index']
  #allocation1 [shape = 'u32[144,128]{1,0:T(1,128)}', space=vmem, size = 0x12000, scoped, tag = 'internal scratch']
  #allocation2 [shape = 'f32[1,1]{1,0:T(1,128)S(6)}', space=smem, size = 0x200, scoped, tag = 'scoped memory for tpu_custom_call.1']
  %s0 = inlined_call_operand.vmem [shape: f32[2,128], index: 0, kind: input, shape index: {}]
  %s1 = inlined_call_operand.vmem [shape: f32[2,32], index: 1, kind: input, shape index: {}]
  %s2 = inlined_call_operand.vmem [shape: f32[128,32], index: 2, kind: input, shape index: {}]
  %s3 = inlined_call_operand.vmem [shape: f32[32,32], index: 3, kind: input, shape index: {}]
  %s4 = inlined_call_operand.vmem [shape: f32[1,32], index: 4, kind: input, shape index: {}]
  %s5 = inlined_call_operand.vmem [shape: f32[1,32], index: 5, kind: input, shape index: {}]
  %s6 = inlined_call_operand.vmem [shape: f32[1,32], index: 6, kind: input, shape index: {}]
  %s7 = inlined_call_operand.<no memory space> [shape: f32[1,1], index: 7, kind: input, shape index: {}]
  %s8 = inlined_call_operand.hbm [shape: f32[1,2], index: 8, kind: output, shape index: {}]
  %s9 = sld [smem:[#allocation0]]
  $region42: #{tpu_custom_call.1} parent=0
    _
  %s11 = ssub.s32 1, %s9
  %s12 = scalar_select 0, %s11, %s9
  %13 = sst [smem:[#allocation2]] %s7
  $region1: #{tpu_custom_call.1} parent=0
    #allocation3 [shape = 'u8[512]{0}', space=vmem, size = 0x400, scoped, tag = 'output window, operand 0, single buffered']
    #allocation4 [shape = 's32[1]{0}', space=sflag, size = 0x4, scoped, tag = 'scoped memory for tpu_custom_call.1']
    %14 = vsyncpa [#allocation4], 0
    // Predicated region
    $region2: #{tpu_custom_call.1} parent=1 // pred_check
      _
    $region3: #{tpu_custom_call.1} parent=1 // pred_check_branch
      %16 = sbr.rel (0) target = $region5
    $region4: #{tpu_custom_call.1} parent=1 // pred_region
      _
    $region5: #{tpu_custom_call.1} parent=1 // pred_fallthru
      _
    // Predicated region
    $region6: #{tpu_custom_call.1} parent=1 // pred_check
      _
    $region7: #{tpu_custom_call.1} parent=1 // pred_check_branch
      %18 = sbr.rel (0) target = $region9
    $region8: #{tpu_custom_call.1} parent=1 // pred_region
      _
    $region9: #{tpu_custom_call.1} parent=1 // pred_fallthru
      _
    // Predicated region
    $region10: #{tpu_custom_call.1} parent=1 // pred_check
      _
    $region11: #{tpu_custom_call.1} parent=1 // pred_check_branch
      %20 = sbr.rel (0) target = $region13
    $region12: #{tpu_custom_call.1} parent=1 // pred_region
      _
    $region13: #{tpu_custom_call.1} parent=1 // pred_fallthru
      _
    // Predicated region
    $region14: #{tpu_custom_call.1} parent=1 // pred_check
      _
    $region15: #{tpu_custom_call.1} parent=1 // pred_check_branch
      %22 = sbr.rel (0) target = $region17
    $region16: #{tpu_custom_call.1} parent=1 // pred_region
      _
    $region17: #{tpu_custom_call.1} parent=1 // pred_fallthru
      _
    // Predicated region
    $region18: #{tpu_custom_call.1} parent=1 // pred_check
      _
    $region19: #{tpu_custom_call.1} parent=1 // pred_check_branch
      %24 = sbr.rel (0) target = $region21
    $region20: #{tpu_custom_call.1} parent=1 // pred_region
      _
    $region21: #{tpu_custom_call.1} parent=1 // pred_fallthru
      _
    // Predicated region
    $region22: #{tpu_custom_call.1} parent=1 // pred_check
      _
    $region23: #{tpu_custom_call.1} parent=1 // pred_check_branch
      %26 = sbr.rel (0) target = $region25
    $region24: #{tpu_custom_call.1} parent=1 // pred_region
      _
    $region25: #{tpu_custom_call.1} parent=1 // pred_fallthru
      _
    // Predicated region
    $region26: #{tpu_custom_call.1} parent=1 // pred_check
      _
    $region27: #{tpu_custom_call.1} parent=1 // pred_check_branch
      %28 = sbr.rel (0) target = $region29
    $region28: #{tpu_custom_call.1} parent=1 // pred_region
      _
    $region29: #{tpu_custom_call.1} parent=1 // pred_fallthru
      _
    // Predicated region
    $region30: #{tpu_custom_call.1} parent=1 // pred_check
      _
    $region31: #{tpu_custom_call.1} parent=1 // pred_check_branch
      %30 = sbr.rel (0) target = $region33
    $region32: #{tpu_custom_call.1} parent=1 // pred_region
      _
    $region33: #{tpu_custom_call.1} parent=1 // pred_fallthru
      _
    %v31 = vld [vmem:[%s0] sm:$0x3]
    %v32 = vld [vmem:[%s2] sm:$0xff]
    %v33 = vld [vmem:[%s2 + $0x8] sm:$0xff]
    %v34 = vld [vmem:[%s2 + $0x10] sm:$0xff]
    %v35 = vld [vmem:[%s2 + $0x18] sm:$0xff]
    %v36 = vld [vmem:[%s2 + $0x20] sm:$0xff]
    %v37 = vld [vmem:[%s2 + $0x28] sm:$0xff]
    %v38 = vld [vmem:[%s2 + $0x30] sm:$0xff]
    %v39 = vld [vmem:[%s2 + $0x38] sm:$0xff]
    %v40 = vld [vmem:[%s2 + $0x40] sm:$0xff]
    %v41 = vld [vmem:[%s2 + $0x48] sm:$0xff]
    %v42 = vld [vmem:[%s2 + $0x50] sm:$0xff]
    %v43 = vld [vmem:[%s2 + $0x58] sm:$0xff]
    %v44 = vld [vmem:[%s2 + $0x60] sm:$0xff]
    %v45 = vld [vmem:[%s2 + $0x68] sm:$0xff]
    %v46 = vld [vmem:[%s2 + $0x70] sm:$0xff]
    %v47 = vld [vmem:[%s2 + $0x78] sm:$0xff]
    %v48 = vld [vmem:[%s4] sm:$0x1]
    %v50 = vlaneseq
    %v51 = vshrl.u32 %v50, 7
    %v52 = vsub.s32 0, %v51
    %v53 = vrot.slane %v48, %v52
    %55 = vmatprep.subr.mxu0 0.0
    %56 = vmatpush1.msra.mxu0 %v47
    %57 = vmatprep.subr.mxu0 0.0
    %58 = vmatpush1.msra.mxu0 %v46
    %59 = vmatprep.subr.mxu0 0.0
    %60 = vmatpush1.msra.mxu0 %v45
    %61 = vmatprep.subr.mxu0 0.0
    %62 = vmatpush1.msra.mxu0 %v44
    %63 = vmatprep.subr.mxu0 0.0
    %64 = vmatpush1.msra.mxu0 %v43
    %65 = vmatprep.subr.mxu0 0.0
    %66 = vmatpush1.msra.mxu0 %v42
    %67 = vmatprep.subr.mxu0 0.0
    %68 = vmatpush1.msra.mxu0 %v41
    %69 = vmatprep.subr.mxu0 0.0
    %70 = vmatpush1.msra.mxu0 %v40
    %71 = vmatprep.subr.mxu0 0.0
    %72 = vmatpush1.msra.mxu0 %v39
    %73 = vmatprep.subr.mxu0 0.0
    %74 = vmatpush1.msra.mxu0 %v38
    %75 = vmatprep.subr.mxu0 0.0
    %76 = vmatpush1.msra.mxu0 %v37
    %77 = vmatprep.subr.mxu0 0.0
    %78 = vmatpush1.msra.mxu0 %v36
    %79 = vmatprep.subr.mxu0 0.0
    %80 = vmatpush1.msra.mxu0 %v35
    %81 = vmatprep.subr.mxu0 0.0
    %82 = vmatpush1.msra.mxu0 %v34
    %83 = vmatprep.subr.mxu0 0.0
    %84 = vmatpush1.msra.mxu0 %v33
    %85 = vmatprep.subr.mxu0 0.0
    %86 = vmatpush1.msra.mxu0 %v32
    %87 = vmatprep.subr.mxu0 0.0
    %88 = vmatpush2.msra.mxu0 0.0
    %89 = vmatprep.subr.mxu0 0.0
    %90 = vmatpush2.msra.mxu0 0.0
    %91 = vmatprep.subr.mxu0 0.0
    %92 = vmatpush2.msra.mxu0 0.0
    %93 = vmatprep.subr.mxu0 0.0
    %94 = vmatpush2.msra.mxu0 0.0
    %95 = vmatprep.subr.mxu0 0.0
    %96 = vmatpush2.msra.mxu0 0.0
    %97 = vmatprep.subr.mxu0 0.0
    %98 = vmatpush2.msra.mxu0 0.0
    %99 = vmatprep.subr.mxu0 0.0
    %100 = vmatpush2.msra.mxu0 0.0
    %101 = vmatprep.subr.mxu0 0.0
    %102 = vmatpush2.msra.mxu0 0.0
    %103 = vmatprep.subr.mxu0 0.0
    %104 = vmatpush2.msra.mxu0 0.0
    %105 = vmatprep.subr.mxu0 0.0
    %106 = vmatpush2.msra.mxu0 0.0
    %107 = vmatprep.subr.mxu0 0.0
    %108 = vmatpush2.msra.mxu0 0.0
    %109 = vmatprep.subr.mxu0 0.0
    %110 = vmatpush2.msra.mxu0 0.0
    %111 = vmatprep.subr.mxu0 0.0
    %112 = vmatpush2.msra.mxu0 0.0
    %113 = vmatprep.subr.mxu0 0.0
    %114 = vmatpush2.msra.mxu0 0.0
    %115 = vmatprep.subr.mxu0 0.0
    %116 = vmatpush2.msra.mxu0 0.0
    %117 = vmatprep.subr.mxu0 0.0
    %118 = vmatpush2.msra.mxu0 0.0
    %119 = vmatprep.mubr.f32.mxu0 0.0
    %120 = vmatmul.mubr.f32.gmra.mxu0 %v31
    %v121 = vpop.f32.mrf.mxu0
    %v122 = vadd.f32 %v53, %v121
    %v123 = vpop.f32.mrf.mxu0
    %124 = vdwg.mxu0
    %v125 = vld [vmem:[%s1] sm:$0x3]
    %v126 = vld [vmem:[%s3] sm:$0xff]
    %v127 = vld [vmem:[%s3 + $0x8] sm:$0xff]
    %v128 = vld [vmem:[%s3 + $0x10] sm:$0xff]
    %v129 = vld [vmem:[%s3 + $0x18] sm:$0xff]
    %v130 = vld [vmem:[%s5] sm:$0x1]
    %v132 = vlaneseq
    %v133 = vshrl.u32 %v132, 7
    %v134 = vsub.s32 0, %v133
    %v135 = vrot.slane %v130, %v134
    %vm137 = vcmask 261120
    %v139 = vsel %vm137, %v125, 0
    %141 = vmatprep.subr.mxu0 0.0
    %142 = vmatpush1.msra.mxu0 0.0
    %143 = vmatprep.subr.mxu0 0.0
    %144 = vmatpush1.msra.mxu0 0.0
    %145 = vmatprep.subr.mxu0 0.0
    %146 = vmatpush1.msra.mxu0 0.0
    %147 = vmatprep.subr.mxu0 0.0
    %148 = vmatpush1.msra.mxu0 0.0
    %149 = vmatprep.subr.mxu0 0.0
    %150 = vmatpush1.msra.mxu0 0.0
    %151 = vmatprep.subr.mxu0 0.0
    %152 = vmatpush1.msra.mxu0 0.0
    %153 = vmatprep.subr.mxu0 0.0
    %154 = vmatpush1.msra.mxu0 0.0
    %155 = vmatprep.subr.mxu0 0.0
    %156 = vmatpush1.msra.mxu0 0.0
    %157 = vmatprep.subr.mxu0 0.0
    %158 = vmatpush1.msra.mxu0 0.0
    %159 = vmatprep.subr.mxu0 0.0
    %160 = vmatpush1.msra.mxu0 0.0
    %161 = vmatprep.subr.mxu0 0.0
    %162 = vmatpush1.msra.mxu0 0.0
    %163 = vmatprep.subr.mxu0 0.0
    %164 = vmatpush1.msra.mxu0 0.0
    %165 = vmatprep.subr.mxu0 0.0
    %166 = vmatpush1.msra.mxu0 %v129
    %167 = vmatprep.subr.mxu0 0.0
    %168 = vmatpush1.msra.mxu0 %v128
    %169 = vmatprep.subr.mxu0 0.0
    %170 = vmatpush1.msra.mxu0 %v127
    %171 = vmatprep.subr.mxu0 0.0
    %172 = vmatpush1.msra.mxu0 %v126
    %173 = vmatprep.subr.mxu0 0.0
    %174 = vmatpush2.msra.mxu0 0.0
    %175 = vmatprep.subr.mxu0 0.0
    %176 = vmatpush2.msra.mxu0 0.0
    %177 = vmatprep.subr.mxu0 0.0
    %178 = vmatpush2.msra.mxu0 0.0
    %179 = vmatprep.subr.mxu0 0.0
    %180 = vmatpush2.msra.mxu0 0.0
    %181 = vmatprep.subr.mxu0 0.0
    %182 = vmatpush2.msra.mxu0 0.0
    %183 = vmatprep.subr.mxu0 0.0
    %184 = vmatpush2.msra.mxu0 0.0
    %185 = vmatprep.subr.mxu0 0.0
    %186 = vmatpush2.msra.mxu0 0.0
    %187 = vmatprep.subr.mxu0 0.0
    %188 = vmatpush2.msra.mxu0 0.0
    %189 = vmatprep.subr.mxu0 0.0
    %190 = vmatpush2.msra.mxu0 0.0
    %191 = vmatprep.subr.mxu0 0.0
    %192 = vmatpush2.msra.mxu0 0.0
    %193 = vmatprep.subr.mxu0 0.0
    %194 = vmatpush2.msra.mxu0 0.0
    %195 = vmatprep.subr.mxu0 0.0
    %196 = vmatpush2.msra.mxu0 0.0
    %197 = vmatprep.subr.mxu0 0.0
    %198 = vmatpush2.msra.mxu0 0.0
    %199 = vmatprep.subr.mxu0 0.0
    %200 = vmatpush2.msra.mxu0 0.0
    %201 = vmatprep.subr.mxu0 0.0
    %202 = vmatpush2.msra.mxu0 0.0
    %203 = vmatprep.subr.mxu0 0.0
    %204 = vmatpush2.msra.mxu0 0.0
    %205 = vmatprep.mubr.f32.mxu0 0.0
    %206 = vmatmul.mubr.f32.gmra.mxu0 %v139
    %v207 = vpop.f32.mrf.mxu0
    %v208 = vadd.f32 %v135, %v207
    %v209 = vpop.f32.mrf.mxu0
    %210 = vdwg.mxu0
    %v211 = vtanh.pop %v122
    %v212 = vtanh.pop %v208
    %v213 = vmul.f32 %v211, %v212
    %v214 = vld [vmem:[%s6] sm:$0x1]
    %v216 = vlaneseq
    %v217 = vshrl.u32 %v216, 7
    %v218 = vsub.s32 0, %v217
    %v219 = vrot.slane %v214, %v218
    %v221 = vmul.f32 %v213, %v219
    %vm222 = vcmask 254976
    %v223 = vsel %vm222, %v221, 0.0
    %224 = vadd.xlane.f32.xlu0 %v223
    %v225 = vpop.xlane.xlu0 %224
    %s226 = sld [smem:[#allocation2]]
    %v227 = vstv %s226
    %v228 = vadd.f32 %v225, %v227
    %v229 = vxor.u32 %v228, 2147483648
    %v230 = vmul.f32 %v229, 1.442695
    %v231 = vpow.pop %v230
    %v232 = vadd.f32 %v231, 1.0
    %v233 = vrcp.pop %v232
    %v234 = vmul.f32 1.0, %v233
    %v236 = vlaneseq
    %v237 = vand.u32 %v236, 127
    %v238 = vlaneseq
    %v239 = vshrl.u32 %v238, 7
    %v240 = vsub.s32 %v237, %v239
    %v241 = vrot.slane %v234, %v240
    %vm243 = vcmask 8192
    %244 = vst.msk [vmem:[#allocation3] sm:$0x1] %vm243, %v241
    // Predicated region
    $region34: #{tpu_custom_call.1} parent=1 // pred_check
      _
    $region35: #{tpu_custom_call.1} parent=1 // pred_check_branch
      %246 = sbr.rel (0) target = $region37
    $region36: #{tpu_custom_call.1} parent=1 // pred_region
      %s248 = ssub.s32 16, 16
      %249 = vsyncadd [#allocation4], %s248
      %s251 = sshll.u32 [#allocation3], 4
      %s252 = int_to_ptr.vmem [resolvable:$true] %s251
      %254 = dma.vmem_to_hbm [thread:$0]  %s252, 16, %s8, [#allocation4]
    $region37: #{tpu_custom_call.1} parent=1 // pred_fallthru
      _
    // Predicated region
    $region38: #{tpu_custom_call.1} parent=1 // pred_check
      _
    $region39: #{tpu_custom_call.1} parent=1 // pred_check_branch
      %256 = sbr.rel (0) target = $region41
    $region40: #{tpu_custom_call.1} parent=1 // pred_region
      %257 = dma.done [#allocation4], 16
    $region41: #{tpu_custom_call.1} parent=1 // pred_fallthru
      _
    %258 = vsyncpa [#allocation4], 1

</llo_original>
